<compile_context>
chip_gen: v6e
topology: v6e:2x2x1
jax: 0.10.0
libtpu: 0.0.40
codegen_flags: <defaults>
</compile_context>

<pallas_src>
import jax
import jax.numpy as jnp
from jax.experimental import pallas as pl
from jax.experimental.pallas import tpu as pltpu

_SOFTPLUS_THRESHOLD = 20.0               # matches PyTorch F.softplus default
_LANE_CANDIDATES = (4096, 2048, 1024, 512, 256, 128)


def _round_up(v, m):
    return (v + m - 1) // m * m


def _mish_kernel(x_ref, o_ref):
    x = x_ref[...].astype(jnp.float32)
    # PyTorch F.softplus uses threshold=20 (softplus(x) == x above it), and
    # tanh(x) == 1.0 to f32 precision there, so mish(x) == x for x > 20.
    # Below the threshold:
    #   tanh(softplus(x)) = ((1+e^x)^2 - 1) / ((1+e^x)^2 + 1) = n / (n + 2),
    #   with n = e^x * (e^x + 2).
    # One exp + one approx reciprocal on the EUP; the reciprocal is refined
    # with a single Newton step (two VPU FMAs -- free in a memory-bound op).
    e = jnp.exp(jnp.minimum(x, _SOFTPLUS_THRESHOLD))
    n = e * (e + 2.0)
    d = n + 2.0
    r = pl.reciprocal(d, approx=True)
    r = r * (2.0 - d * r)                # Newton refinement -> ~full f32 accuracy
    t = jnp.where(x > _SOFTPLUS_THRESHOLD, 1.0, n * r)
    o_ref[...] = (x * t).astype(o_ref.dtype)


def _tpu_generation_params():
    """Returns (block_budget_bytes, vmem_limit_bytes, min_grid_steps)."""
    try:
        vmem_cap = int(pltpu.get_tpu_info().vmem_capacity_bytes)
    except Exception:
        vmem_cap = 64 * 1024 * 1024      # conservative (v7x-like) fallback
    if vmem_cap >= 96 * 1024 * 1024:
        # v5e / v6e: 128 MiB physical VMEM, one TensorCore per chip.
        return 6 * 1024 * 1024, 48 * 1024 * 1024, 4
    # v7x: 64 MiB VMEM per TC, two TensorCores share the "parallel" grid axis.
    return 4 * 1024 * 1024, 32 * 1024 * 1024, 8


def _pick_tiling(rows, rows_budget, min_steps):
    """Choose (tile_rows, grid_steps): budget-bounded, pipeline-deep, even grid."""
    if rows <= 8:
        return rows, 1
    max_steps = pl.cdiv(rows, 8)         # smallest legal tile is 8 sublanes
    want = min(max(min_steps, pl.cdiv(rows, rows_budget)), max_steps)

    def plan(steps):
        tile = min(rows_budget, max(8, _round_up(pl.cdiv(rows, steps), 8)))
        return tile, pl.cdiv(rows, tile)

    tile, grid = plan(want)
    if grid % 2:  # prefer an even grid so v7x's two TCs split work evenly
        for steps in range(max(1, want - 2), min(max_steps, want + 6) + 1):
            t2, g2 = plan(steps)
            if g2 >= 2 and g2 % 2 == 0:
                return t2, g2
    return tile, grid


def mish(x):
    orig_shape = x.shape
    total = x.size
    itemsize = jnp.dtype(x.dtype).itemsize

    # Lane-dense layout: widest lane count that divides the element count so
    # no pad / slice (each would cost a full extra HBM pass) is needed.
    lanes = None
    for cand in _LANE_CANDIDATES:
        if total % cand == 0:
            lanes = cand
            break
    needs_pad = lanes is None
    if needs_pad:
        lanes = 128                      # minimal-pad fallback (total % 128 != 0)
    padded = _round_up(total, lanes)

    flat = x.reshape(-1)
    if needs_pad:
        flat = jnp.pad(flat, (0, padded - total))   # mish(0) == 0, safe
    rows = padded // lanes
    x2d = flat.reshape(rows, lanes)

    block_budget, vmem_limit, min_steps = _tpu_generation_params()
    rows_budget = max(8, (block_budget // (lanes * itemsize)) // 8 * 8)
    tile_rows, grid_steps = _pick_tiling(rows, rows_budget, min_steps)

    out2d = pl.pallas_call(
        _mish_kernel,
        out_shape=jax.ShapeDtypeStruct((rows, lanes), x.dtype),
        grid=(grid_steps,),
        in_specs=[pl.BlockSpec((tile_rows, lanes), lambda i: (i, 0))],
        out_specs=pl.BlockSpec((tile_rows, lanes), lambda i: (i, 0)),
        compiler_params=pltpu.CompilerParams(
            dimension_semantics=("parallel",),
            vmem_limit_bytes=vmem_limit,
        ),
    )(x2d)

    out_flat = out2d.reshape(-1)
    if needs_pad:
        out_flat = out_flat[:total]
    return out_flat.reshape(orig_shape)


def mish_ref(x):
    xf = x.astype(jnp.float32)
    sp = jnp.where(xf > _SOFTPLUS_THRESHOLD, xf,
                   jnp.log1p(jnp.exp(jnp.minimum(xf, _SOFTPLUS_THRESHOLD))))
    return (xf * jnp.tanh(sp)).astype(x.dtype)


if __name__ == "__main__":
    key = jax.random.PRNGKey(0)
    x = jax.random.normal(key, (2, 4, 16, 16), dtype=jnp.float32) * 5.0

    y = mish(x)
    jax.block_until_ready(y)

    y_ref = mish_ref(x)
    assert y.shape == x.shape and y.dtype == x.dtype
    max_err = float(jnp.max(jnp.abs(y - y_ref)))
    # Newton-refined reciprocal + exact f32 exp -> only a few ULP of drift.
    assert jnp.allclose(y, y_ref, atol=1e-4, rtol=1e-4), max_err
    print("KERNEL_OK")
</pallas_src>

<mosaic_0001>
module attributes {stable_mosaic.version = 11 : i64} {
  func.func @_mish_kernel(%arg0: i32, %arg1: memref<1x2048xf32, #tpu.memory_space<vmem>>, %arg2: memref<1x2048xf32, #tpu.memory_space<vmem>>) attributes {dimension_semantics = [#tpu.dimension_semantics<parallel>], iteration_bounds = array<i64: 1>, scalar_prefetch = 0 : i64, scratch_operands = 0 : i64, tpu.core_type = #tpu.core_type<tc>, window_params = [{transform_indices = @transform_0, window_bounds = array<i64: 1, 2048>}, {transform_indices = @transform_1, window_bounds = array<i64: 1, 2048>}]} {
    %c0 = arith.constant 0 : index
    %c0_0 = arith.constant 0 : index
    %0 = vector.load %arg1[%c0, %c0_0] : memref<1x2048xf32, #tpu.memory_space<vmem>>, vector<1x2048xf32>
    %cst = arith.constant 2.000000e+01 : f32
    %1 = vector.broadcast %cst : f32 to vector<1x2048xf32>
    %2 = arith.minimumf %0, %1 : vector<1x2048xf32>
    %3 = math.exp %2 : vector<1x2048xf32>
    %cst_1 = arith.constant 2.000000e+00 : f32
    %4 = vector.broadcast %cst_1 : f32 to vector<1x2048xf32>
    %5 = arith.addf %3, %4 : vector<1x2048xf32>
    %6 = arith.mulf %3, %5 : vector<1x2048xf32>
    %cst_2 = arith.constant 2.000000e+00 : f32
    %7 = vector.broadcast %cst_2 : f32 to vector<1x2048xf32>
    %8 = arith.addf %6, %7 : vector<1x2048xf32>
    %9 = tpu.reciprocal %8 {approx = true} : vector<1x2048xf32> -> vector<1x2048xf32>
    %10 = arith.mulf %8, %9 : vector<1x2048xf32>
    %cst_3 = arith.constant 2.000000e+00 : f32
    %11 = vector.broadcast %cst_3 : f32 to vector<1x2048xf32>
    %12 = arith.subf %11, %10 : vector<1x2048xf32>
    %13 = arith.mulf %9, %12 : vector<1x2048xf32>
    %cst_4 = arith.constant 2.000000e+01 : f32
    %14 = vector.broadcast %cst_4 : f32 to vector<1x2048xf32>
    %15 = arith.cmpf ogt, %0, %14 : vector<1x2048xf32>
    %16 = arith.mulf %6, %13 : vector<1x2048xf32>
    %cst_5 = arith.constant 1.000000e+00 : f32
    %17 = vector.broadcast %cst_5 : f32 to vector<1x2048xf32>
    %18 = arith.select %15, %17, %16 : vector<1x2048xi1>, vector<1x2048xf32>
    %19 = arith.mulf %0, %18 : vector<1x2048xf32>
    %c0_6 = arith.constant 0 : index
    %c0_7 = arith.constant 0 : index
    %20 = vector.load %arg2[%c0_6, %c0_7] : memref<1x2048xf32, #tpu.memory_space<vmem>>, vector<1x2048xf32>
    tpu.vector_store %arg2[%c0_6, %c0_7], %19 {strides = array<i32>} : memref<1x2048xf32, #tpu.memory_space<vmem>>, vector<1x2048xf32>,
    return
  }
  func.func @transform_0(%arg0: i32) -> (i32, i32) {
    %c0_i32 = arith.constant 0 : i32
    %c0_i32_0 = arith.constant 0 : i32
    return %arg0, %c0_i32 : i32, i32
  }
  func.func @transform_1(%arg0: i32) -> (i32, i32) {
    %c0_i32 = arith.constant 0 : i32
    %c0_i32_0 = arith.constant 0 : i32
    return %arg0, %c0_i32 : i32, i32
  }
}

</mosaic_0001>

<llo_original>
// kernel: tpu_custom_call.1
$region0: #{tpu_custom_call.1}
  #allocation0 [shape = 'u32[]', space=smem, size = 0x4, offset = 0x4, fixed_abs, tag = 'smem constant byte address 0x4 - core index']
  #allocation1 [shape = 'u32[144,128]{1,0:T(1,128)}', space=vmem, size = 0x12000, scoped, tag = 'internal scratch']
  %s0 = inlined_call_operand.hbm [shape: f32[1,2048], index: 0, kind: input, shape index: {}]
  %s1 = inlined_call_operand.hbm [shape: f32[1,2048], index: 1, kind: output, shape index: {}]
  %s2 = sld [smem:[#allocation0]]
  $region18: #{tpu_custom_call.1} parent=0
    _
  %s4 = ssub.s32 1, %s2
  %s5 = scalar_select 0, %s4, %s2
  $region1: #{tpu_custom_call.1} parent=0
    #allocation2 [shape = 'u8[8192]{0}', space=vmem, size = 0x2000, scoped, tag = 'input window, operand 0, single buffered']
    #allocation3 [shape = 's32[1]{0}', space=sflag, size = 0x4, scoped, tag = 'scoped memory for tpu_custom_call.1']
    #allocation4 [shape = 's32[1]{0}', space=sflag, size = 0x4, scoped, tag = 'scoped memory for tpu_custom_call.1']
    #allocation5 [shape = 'u8[8192]{0}', space=vmem, size = 0x2000, scoped, tag = 'output window, operand 0, single buffered']
    %6 = vsyncpa [#allocation3], 0
    %7 = vsyncpa [#allocation4], 0
    // Predicated region
    $region2: #{tpu_custom_call.1} parent=1 // pred_check
      _
    $region3: #{tpu_custom_call.1} parent=1 // pred_check_branch
      %9 = sbr.rel (0) target = $region5
    $region4: #{tpu_custom_call.1} parent=1 // pred_region
      %s11 = ssub.s32 256, 256
      %12 = vsyncadd [#allocation3], %s11
      %s14 = sshll.u32 [#allocation2], 4
      %s15 = int_to_ptr.vmem [resolvable:$true] %s14
      %17 = dma.hbm_to_vmem [thread:$0]  %s0, 256, %s15, [#allocation3]
    $region5: #{tpu_custom_call.1} parent=1 // pred_fallthru
      _
    // Predicated region
    $region6: #{tpu_custom_call.1} parent=1 // pred_check
      _
    $region7: #{tpu_custom_call.1} parent=1 // pred_check_branch
      %19 = sbr.rel (0) target = $region9
    $region8: #{tpu_custom_call.1} parent=1 // pred_region
      %20 = dma.done [#allocation3], 256
    $region9: #{tpu_custom_call.1} parent=1 // pred_fallthru
      _
    %v21 = vld [vmem:[#allocation2] sm:$0xff]
    %v22 = vld [vmem:[#allocation2 + $0x8] sm:$0xff]
    %v23 = vmin.f32 %v21, 20.0
    %v24 = vmin.f32 %v22, 20.0
    %v25 = vmul.f32 %v23, 1.442695
    %v26 = vpow.pop %v25
    %v27 = vmul.f32 %v24, 1.442695
    %v28 = vpow.pop %v27
    %v29 = vadd.f32 %v26, 2.0
    %v30 = vadd.f32 %v28, 2.0
    %v31 = vmul.f32 %v26, %v29
    %v32 = vmul.f32 %v28, %v30
    %v33 = vadd.f32 %v31, 2.0
    %v34 = vadd.f32 %v32, 2.0
    %v35 = vrcp.pop %v33
    %v36 = vrcp.pop %v34
    %v37 = vmul.f32 %v33, %v35
    %v38 = vmul.f32 %v34, %v36
    %v39 = vsub.f32 2.0, %v37
    %v40 = vsub.f32 2.0, %v38
    %v41 = vmul.f32 %v35, %v39
    %v42 = vmul.f32 %v36, %v40
    %vm43 = vcmp.gt.f32.partialorder %v21, 20.0
    %vm44 = vcmp.gt.f32.partialorder %v22, 20.0
    %v45 = vmul.f32 %v31, %v41
    %v46 = vmul.f32 %v32, %v42
    %v47 = vsel %vm43, 1.0, %v45
    %v48 = vsel %vm44, 1.0, %v46
    %v49 = vmul.f32 %v21, %v47
    %v50 = vmul.f32 %v22, %v48
    %51 = vst [vmem:[#allocation5] sm:$0xff] %v49
    %52 = vst [vmem:[#allocation5 + $0x8] sm:$0xff] %v50
    // Predicated region
    $region10: #{tpu_custom_call.1} parent=1 // pred_check
      _
    $region11: #{tpu_custom_call.1} parent=1 // pred_check_branch
      %54 = sbr.rel (0) target = $region13
    $region12: #{tpu_custom_call.1} parent=1 // pred_region
      %s56 = ssub.s32 256, 256
      %57 = vsyncadd [#allocation4], %s56
      %s59 = sshll.u32 [#allocation5], 4
      %s60 = int_to_ptr.vmem [resolvable:$true] %s59
      %62 = dma.vmem_to_hbm [thread:$0]  %s60, 256, %s1, [#allocation4]
    $region13: #{tpu_custom_call.1} parent=1 // pred_fallthru
      _
    // Predicated region
    $region14: #{tpu_custom_call.1} parent=1 // pred_check
      _
    $region15: #{tpu_custom_call.1} parent=1 // pred_check_branch
      %64 = sbr.rel (0) target = $region17
    $region16: #{tpu_custom_call.1} parent=1 // pred_region
      %65 = dma.done [#allocation4], 256
    $region17: #{tpu_custom_call.1} parent=1 // pred_fallthru
      _
    %66 = vsyncpa [#allocation3], 1
    %67 = vsyncpa [#allocation4], 1

</llo_original>
